<compile_context>
chip_gen: v7x
topology: tpu7x:2x2x1
jax: 0.10.0
libtpu: 0.0.40
codegen_flags: <defaults>
</compile_context>

<pallas_src>
import jax
import jax.numpy as jnp
from jax import lax
from jax.experimental import pallas as pl
from jax.experimental.pallas import tpu as pltpu


# ---------------------------------------------------------------------------
# Hardware-aware helpers.
# ---------------------------------------------------------------------------
def _vmem_budget_bytes():
    """75% of physical VMEM per TensorCore (96 MiB v5e/v6e, 48 MiB v7x)."""
    phys = 64 * 2**20
    try:
        cap = getattr(pltpu.get_tpu_info(), "vmem_capacity_bytes", None)
        if cap:
            phys = int(cap)
    except Exception:
        pass
    return (phys * 3) // 4


def _pick_loss_tiles(b, d_pad, in_item, vmem_budget):
    """Rectangular tiles: large row tile for u, 256-wide column tile for v."""
    b_cap = 128
    while b_cap < b and b_cap < 1024:
        b_cap *= 2
    tile_j = 256 if b_cap >= 256 else 128      # fills the 256x256 MXU on v6e/v7x
    tile_i = tile_j
    for cand in (1024, 512, 256, 128):         # biggest row tile that fits VMEM
        if cand > b_cap or cand < tile_j:
            continue
        est = (2 * cand * d_pad * in_item      # u row tile, double-buffered
               + 2 * tile_j * d_pad * in_item  # v column tile, double-buffered
               + 6 * cand * tile_j * 4         # f32 sim/logits/softplus temporaries
               + 2 * 8 * tile_j * 4)           # resident output slab
        if est <= vmem_budget:
            tile_i = cand
            break
    return tile_i, tile_j


# ---------------------------------------------------------------------------
# Row-wise L2 normalization kernel (hoisted; optionally folds in a scale).
# ---------------------------------------------------------------------------
def _normalize_kernel(scale_ref, x_ref, o_ref):
    x = x_ref[...].astype(jnp.float32)
    ssq = jnp.sum(x * x, axis=1, keepdims=True)
    # F.normalize(x, dim=1): x / max(||x||, 1e-12) == x * rsqrt(max(||x||^2, 1e-24))
    inv = lax.rsqrt(jnp.maximum(ssq, 1e-24)) * scale_ref[0]
    o_ref[...] = (x * inv).astype(o_ref.dtype)


def _normalize(x, scale, tile_n, out_dtype, vmem_limit):
    bp, dp = x.shape
    scale = jnp.reshape(jnp.asarray(scale, jnp.float32), (1,))
    return pl.pallas_call(
        _normalize_kernel,
        out_shape=jax.ShapeDtypeStruct((bp, dp), out_dtype),
        grid=(bp // tile_n,),
        in_specs=[
            pl.BlockSpec(memory_space=pltpu.SMEM),               # scale scalar
            pl.BlockSpec((tile_n, dp), lambda i: (i, 0)),
        ],
        out_specs=pl.BlockSpec((tile_n, dp), lambda i: (i, 0)),
        compiler_params=pltpu.CompilerParams(
            dimension_semantics=("parallel",),
            vmem_limit_bytes=vmem_limit),
    )(scale, x)


# ---------------------------------------------------------------------------
# Tiled sigmoid-loss kernel.
# ---------------------------------------------------------------------------
def _fold_rows(x):
    """Tree-fold a (R, tile_j) f32 tile to an (8, tile_j) slab.

    Sublane-aligned static halvings + elementwise adds: pure VPU, layout
    preserving, log-depth dependency chain."""
    r = x.shape[0]
    while r > 8:
        half = r // 2
        x = x[:half, :] + x[half:, :]
        r = half
    return x


def _softplus(x):
    # Stable softplus using only exp/log (guaranteed Mosaic lowering).
    return jnp.maximum(x, 0.0) + jnp.log(1.0 + jnp.exp(-jnp.abs(x)))


def _make_loss_kernel(tile_i, tile_j):
    def kernel(bt_ref, u_ref, v_ref, out_ref):
        i = pl.program_id(0)
        j = pl.program_id(1)

        # Output block is resident across the j (reduction) axis: init at j == 0.
        @pl.when(j == 0)
        def _init():
            out_ref[...] = jnp.zeros_like(out_ref)

        # sim[r, c] = temp * <u_i[r], v_j[c]>  (temp folded into u upstream).
        # Trans-B contraction: MXU-native, no XLU transpose; f32 accumulation.
        sim = lax.dot_general(
            u_ref[...], v_ref[...],
            dimension_numbers=(((1,), (1,)), ((), ())),
            preferred_element_type=jnp.float32)

        logits = sim - bt_ref[0]                 # bias*temp from SMEM
        neg = _softplus(logits)                  # -log(1 - sigmoid(logits)), exact
        base_slab = _fold_rows(neg)

        row0 = i * tile_i
        col0 = j * tile_j
        touches_diag = jnp.logical_and(row0 < col0 + tile_j, col0 < row0 + tile_i)

        @pl.when(jnp.logical_not(touches_diag))
        def _off_diag():
            out_ref[...] += base_slab[None]

        # Diagonal-touching tiles: positive-pair correction pos - neg == -logits,
        # fused into a single output read-modify-write.
        @pl.when(touches_diag)
        def _diag():
            rows = row0 + lax.broadcasted_iota(jnp.int32, (tile_i, tile_j), 0)
            cols = col0 + lax.broadcasted_iota(jnp.int32, (tile_i, tile_j), 1)
            corr = jnp.where(rows == cols, -logits, 0.0)
            out_ref[...] += (base_slab + _fold_rows(corr))[None]

    return kernel


def siglip_loss(u, v, log_temperature, relative_bias, *,
                compute_dtype=jnp.bfloat16, tile_i=None, tile_j=None):
    """SigLIP loss. u, v: [B, D]; log_temperature, relative_bias: shape (1,) f32."""
    b, d = u.shape
    in_item = jnp.dtype(compute_dtype).itemsize
    d_pad = -(-d // 128) * 128
    vmem_budget = _vmem_budget_bytes()

    auto_i, auto_j = _pick_loss_tiles(b, d_pad, in_item, vmem_budget)
    tile_i = auto_i if tile_i is None else tile_i
    tile_j = auto_j if tile_j is None else tile_j
    tile_i = max(tile_i, tile_j)               # keeps b_pad divisible by both

    b_pad = -(-b // tile_i) * tile_i
    if (b_pad, d_pad) != (b, d):
        u = jnp.pad(u, ((0, b_pad - b), (0, d_pad - d)))
        v = jnp.pad(v, ((0, b_pad - b), (0, d_pad - d)))

    log_t = jnp.reshape(jnp.asarray(log_temperature, jnp.float32), (1,))[0]
    bias = jnp.reshape(jnp.asarray(relative_bias, jnp.float32), (1,))[0]
    temp = jnp.exp(log_t)
    bt = jnp.reshape(bias * temp, (1,))        # bias * temp, SMEM scalar

    # Hoisted normalization (memory-bound): fold temperature into u for free.
    tile_n = min(256 if d_pad <= 2048 else 128, tile_i)
    un = _normalize(u, temp, tile_n, compute_dtype, vmem_budget)
    vn = _normalize(v, jnp.float32(1.0), tile_n, compute_dtype, vmem_budget)

    n_i = b_pad // tile_i
    n_j = b_pad // tile_j

    # TODO(synk): for very large D on v7x, u could use pipeline_mode=pl.Buffered(1)
    # (its block index is constant across j) and v pl.Buffered(3) for tiny D;
    # omitted here to keep the lowering maximally portable.
    partials = pl.pallas_call(
        _make_loss_kernel(tile_i, tile_j),
        out_shape=jax.ShapeDtypeStruct((n_i, 8, tile_j), jnp.float32),
        grid=(n_i, n_j),
        in_specs=[
            pl.BlockSpec(memory_space=pltpu.SMEM),                # bias*temp
            pl.BlockSpec((tile_i, d_pad), lambda i, j: (i, 0)),   # u row tile
            pl.BlockSpec((tile_j, d_pad), lambda i, j: (j, 0)),   # v column tile
        ],
        out_specs=pl.BlockSpec((1, 8, tile_j), lambda i, j: (i, 0, 0)),
        compiler_params=pltpu.CompilerParams(
            dimension_semantics=("parallel", "arbitrary"),
            vmem_limit_bytes=vmem_budget),
        cost_estimate=pl.CostEstimate(
            flops=int(2 * b_pad * b_pad * d_pad),
            transcendentals=int(2 * b_pad * b_pad),
            bytes_accessed=int((n_i + 1) * b_pad * d_pad * in_item
                               + n_i * 8 * tile_j * 4)),
    )(bt, un, vn)

    total = jnp.sum(partials)

    # Padded rows normalize to exactly 0, so every padded pair has
    # logits == -bias*temp.  Subtract their contribution analytically
    # instead of masking inside the kernel (zero per-tile cost).
    if b_pad != b:
        bt0 = bt[0]
        sp_pad = _softplus(-bt0)               # negative-pair loss of a padded pair
        n_pad_diag = b_pad - b                 # padded diagonal entries
        n_pad_total = b_pad * b_pad - b * b    # all padded entries
        total = total - (n_pad_total * sp_pad + n_pad_diag * bt0)

    return total / (b * b)


# ---------------------------------------------------------------------------
# Pure-JAX reference (mirrors the PyTorch forward).
# ---------------------------------------------------------------------------
def siglip_loss_ref(u, v, log_temperature, relative_bias):
    un = u / jnp.maximum(jnp.linalg.norm(u, axis=1, keepdims=True), 1e-12)
    vn = v / jnp.maximum(jnp.linalg.norm(v, axis=1, keepdims=True), 1e-12)
    sim = un @ vn.T
    temp = jnp.exp(log_temperature[0])
    logits = sim * temp - relative_bias[0] * temp
    sig = jax.nn.sigmoid(logits)
    labels = jnp.eye(u.shape[0], dtype=jnp.float32)
    pos = -jnp.log(sig + 1e-8) * labels
    neg = -jnp.log(1.0 - sig + 1e-8) * (1.0 - labels)
    return jnp.mean(pos + neg)


if __name__ == "__main__":
    key = jax.random.PRNGKey(0)
    ku, kv, ku2, kv2 = jax.random.split(key, 4)

    # Tile-aligned shapes.
    B, D = 256, 128
    u = jax.random.normal(ku, (B, D), dtype=jnp.float32)
    v = jax.random.normal(kv, (B, D), dtype=jnp.float32)
    log_temperature = jnp.log(jnp.array([1.5], dtype=jnp.float32))
    relative_bias = jnp.array([0.2], dtype=jnp.float32)

    ref = siglip_loss_ref(u, v, log_temperature, relative_bias)

    # f32 MXU feed: tight match to the reference semantics.
    loss_f32 = siglip_loss(u, v, log_temperature, relative_bias,
                           compute_dtype=jnp.float32)
    jax.block_until_ready(loss_f32)
    assert jnp.allclose(loss_f32, ref, atol=1e-3, rtol=1e-3), (loss_f32, ref)

    # bf16 MXU feed (default fast path, f32 accumulation): looser tolerance.
    loss_bf16 = siglip_loss(u, v, log_temperature, relative_bias)
    jax.block_until_ready(loss_bf16)
    assert jnp.allclose(loss_bf16, ref, atol=2e-2, rtol=2e-2), (loss_bf16, ref)

    # Exercise rectangular tiling (row tile > column tile) explicitly.
    loss_rect = siglip_loss(u, v, log_temperature, relative_bias,
                            compute_dtype=jnp.float32, tile_i=256, tile_j=128)
    jax.block_until_ready(loss_rect)
    assert jnp.allclose(loss_rect, ref, atol=1e-3, rtol=1e-3), (loss_rect, ref)

    # Unaligned shapes -> internal zero-padding + analytic padding correction.
    B2, D2 = 72, 48
    u2 = jax.random.normal(ku2, (B2, D2), dtype=jnp.float32)
    v2 = jax.random.normal(kv2, (B2, D2), dtype=jnp.float32)
    ref2 = siglip_loss_ref(u2, v2, log_temperature, relative_bias)
    loss2 = siglip_loss(u2, v2, log_temperature, relative_bias,
                        compute_dtype=jnp.float32)
    jax.block_until_ready(loss2)
    assert jnp.allclose(loss2, ref2, atol=1e-3, rtol=1e-3), (loss2, ref2)

    print("KERNEL_OK")
</pallas_src>

<mosaic_0001>
module attributes {stable_mosaic.version = 11 : i64} {
  func.func @_normalize_kernel(%arg0: i32, %arg1: memref<1xf32, #tpu.memory_space<smem>>, %arg2: memref<256x128xf32, #tpu.memory_space<vmem>>, %arg3: memref<256x128xf32, #tpu.memory_space<vmem>>) attributes {dimension_semantics = [#tpu.dimension_semantics<parallel>], iteration_bounds = array<i64: 1>, scalar_prefetch = 0 : i64, scratch_operands = 0 : i64, tpu.core_type = #tpu.core_type<tc>, window_params = [{transform_indices = @transform_0, window_bounds = array<i64: 1>}, {transform_indices = @transform_1, window_bounds = array<i64: 256, 128>}, {transform_indices = @transform_2, window_bounds = array<i64: 256, 128>}]} {
    %c0 = arith.constant 0 : index
    %c0_0 = arith.constant 0 : index
    %0 = vector.load %arg2[%c0, %c0_0] : memref<256x128xf32, #tpu.memory_space<vmem>>, vector<256x128xf32>
    %1 = arith.mulf %0, %0 : vector<256x128xf32>
    %cst = arith.constant dense<0.000000e+00> : vector<256xf32>
    %2 = vector.multi_reduction <add>, %1, %cst [1] : vector<256x128xf32> to vector<256xf32>
    %3 = vector.shape_cast %2 : vector<256xf32> to vector<256x1xf32>
    %cst_1 = arith.constant 1.000000e-24 : f32
    %4 = vector.broadcast %cst_1 : f32 to vector<256x1xf32>
    %5 = arith.maximumf %3, %4 : vector<256x1xf32>
    %6 = math.rsqrt %5 : vector<256x1xf32>
    %c0_2 = arith.constant 0 : index
    %7 = memref.load %arg1[%c0_2] : memref<1xf32, #tpu.memory_space<smem>>
    %8 = vector.broadcast %7 : f32 to vector<256x1xf32>
    %9 = arith.mulf %6, %8 : vector<256x1xf32>
    %10 = vector.broadcast %9 : vector<256x1xf32> to vector<256x128xf32>
    %11 = arith.mulf %0, %10 : vector<256x128xf32>
    %c0_3 = arith.constant 0 : index
    %c0_4 = arith.constant 0 : index
    %12 = vector.load %arg3[%c0_3, %c0_4] : memref<256x128xf32, #tpu.memory_space<vmem>>, vector<256x128xf32>
    tpu.vector_store %arg3[%c0_3, %c0_4], %11 {strides = array<i32>} : memref<256x128xf32, #tpu.memory_space<vmem>>, vector<256x128xf32>,
    return
  }
  func.func @transform_0(%arg0: i32) -> i32 {
    %c0_i32 = arith.constant 0 : i32
    %c0_i32_0 = arith.constant 0 : i32
    return %c0_i32 : i32
  }
  func.func @transform_1(%arg0: i32) -> (i32, i32) {
    %c0_i32 = arith.constant 0 : i32
    %c0_i32_0 = arith.constant 0 : i32
    return %arg0, %c0_i32 : i32, i32
  }
  func.func @transform_2(%arg0: i32) -> (i32, i32) {
    %c0_i32 = arith.constant 0 : i32
    %c0_i32_0 = arith.constant 0 : i32
    return %arg0, %c0_i32 : i32, i32
  }
}

</mosaic_0001>

<llo_original>
// kernel: tpu_custom_call.1
$region0: #{tpu_custom_call.1}
  #allocation0 [shape = 'u32[]', space=smem, size = 0x4, offset = 0x4, fixed_abs, tag = 'smem constant byte address 0x4 - core index']
  #allocation1 [shape = 'u32[144,128]{1,0:T(1,128)}', space=vmem, size = 0x12000, scoped, tag = 'internal scratch']
  #allocation2 [shape = 'f32[1]{0:T(128)S(6)}', space=smem, size = 0x200, scoped, tag = 'scoped memory for tpu_custom_call.1']
  %s0 = inlined_call_operand.<no memory space> [shape: f32[1], index: 0, kind: input, shape index: {}]
  %s1 = inlined_call_operand.hbm [shape: f32[256,128], index: 1, kind: input, shape index: {}]
  %s2 = inlined_call_operand.hbm [shape: f32[256,128], index: 2, kind: output, shape index: {}]
  %s3 = sld [smem:[#allocation0]]
  $region22: #{tpu_custom_call.1} parent=0
    _
  %s5 = ssub.s32 1, %s3
  %s6 = scalar_select 0, %s5, %s3
  %7 = sst [smem:[#allocation2]] %s0
  $region1: #{tpu_custom_call.1} parent=0
    #allocation3 [shape = 'u8[131072]{0}', space=vmem, size = 0x20000, scoped, tag = 'input window, operand 1, single buffered']
    #allocation4 [shape = 's32[1]{0}', space=sflag, size = 0x4, scoped, tag = 'scoped memory for tpu_custom_call.1']
    #allocation5 [shape = 's32[1]{0}', space=sflag, size = 0x4, scoped, tag = 'scoped memory for tpu_custom_call.1']
    #allocation6 [shape = 'u8[131072]{0}', space=vmem, size = 0x20000, scoped, tag = 'output window, operand 0, single buffered']
    %8 = vsyncpa [#allocation4], 0
    %9 = vsyncpa [#allocation5], 0
    // Predicated region
    $region2: #{tpu_custom_call.1} parent=1 // pred_check
      _
    $region3: #{tpu_custom_call.1} parent=1 // pred_check_branch
      %11 = sbr.rel (0) target = $region5
    $region4: #{tpu_custom_call.1} parent=1 // pred_region
      _
    $region5: #{tpu_custom_call.1} parent=1 // pred_fallthru
      _
    // Predicated region
    $region6: #{tpu_custom_call.1} parent=1 // pred_check
      _
    $region7: #{tpu_custom_call.1} parent=1 // pred_check_branch
      %13 = sbr.rel (0) target = $region9
    $region8: #{tpu_custom_call.1} parent=1 // pred_region
      %s15 = ssub.s32 4096, 4096
      %16 = vsyncadd [#allocation4], %s15
      %s17 = sshll.u32 [#allocation3], 4
      %s18 = int_to_ptr.vmem [resolvable:$true] %s17
      %23 = dma.hbm_to_vmem [thread:$0]  %s1, 4096, %s18, [#allocation4], 128, 128, 8
    $region9: #{tpu_custom_call.1} parent=1 // pred_fallthru
      _
    // Predicated region
    $region10: #{tpu_custom_call.1} parent=1 // pred_check
      _
    $region11: #{tpu_custom_call.1} parent=1 // pred_check_branch
      %25 = sbr.rel (0) target = $region13
    $region12: #{tpu_custom_call.1} parent=1 // pred_region
      %26 = dma.done [#allocation4], 4096
    $region13: #{tpu_custom_call.1} parent=1 // pred_fallthru
      _
    %v27 = vld [vmem:[#allocation3] sm:$0xff]
    %v28 = vld [vmem:[#allocation3 + $0x8] sm:$0xff]
    %v29 = vld [vmem:[#allocation3 + $0x10] sm:$0xff]
    %v30 = vld [vmem:[#allocation3 + $0x18] sm:$0xff]
    %v31 = vld [vmem:[#allocation3 + $0x20] sm:$0xff]
    %v32 = vld [vmem:[#allocation3 + $0x28] sm:$0xff]
    %v33 = vld [vmem:[#allocation3 + $0x30] sm:$0xff]
    %v34 = vld [vmem:[#allocation3 + $0x38] sm:$0xff]
    %v35 = vld [vmem:[#allocation3 + $0x40] sm:$0xff]
    %v36 = vld [vmem:[#allocation3 + $0x48] sm:$0xff]
    %v37 = vld [vmem:[#allocation3 + $0x50] sm:$0xff]
    %v38 = vld [vmem:[#allocation3 + $0x58] sm:$0xff]
    %v39 = vld [vmem:[#allocation3 + $0x60] sm:$0xff]
    %v40 = vld [vmem:[#allocation3 + $0x68] sm:$0xff]
    %v41 = vld [vmem:[#allocation3 + $0x70] sm:$0xff]
    %v42 = vld [vmem:[#allocation3 + $0x78] sm:$0xff]
    %v43 = vld [vmem:[#allocation3 + $0x80] sm:$0xff]
    %v44 = vld [vmem:[#allocation3 + $0x88] sm:$0xff]
    %v45 = vld [vmem:[#allocation3 + $0x90] sm:$0xff]
    %v46 = vld [vmem:[#allocation3 + $0x98] sm:$0xff]
    %v47 = vld [vmem:[#allocation3 + $0xa0] sm:$0xff]
    %v48 = vld [vmem:[#allocation3 + $0xa8] sm:$0xff]
    %v49 = vld [vmem:[#allocation3 + $0xb0] sm:$0xff]
    %v50 = vld [vmem:[#allocation3 + $0xb8] sm:$0xff]
    %v51 = vld [vmem:[#allocation3 + $0xc0] sm:$0xff]
    %v52 = vld [vmem:[#allocation3 + $0xc8] sm:$0xff]
    %v53 = vld [vmem:[#allocation3 + $0xd0] sm:$0xff]
    %v54 = vld [vmem:[#allocation3 + $0xd8] sm:$0xff]
    %v55 = vld [vmem:[#allocation3 + $0xe0] sm:$0xff]
    %v56 = vld [vmem:[#allocation3 + $0xe8] sm:$0xff]
    %v57 = vld [vmem:[#allocation3 + $0xf0] sm:$0xff]
    %v58 = vld [vmem:[#allocation3 + $0xf8] sm:$0xff]
    %v59 = vmul.f32 %v27, %v27
    %v60 = vmul.f32 %v28, %v28
    %v61 = vmul.f32 %v29, %v29
    %v62 = vmul.f32 %v30, %v30
    %v63 = vmul.f32 %v31, %v31
    %v64 = vmul.f32 %v32, %v32
    %v65 = vmul.f32 %v33, %v33
    %v66 = vmul.f32 %v34, %v34
    %v67 = vmul.f32 %v35, %v35
    %v68 = vmul.f32 %v36, %v36
    %v69 = vmul.f32 %v37, %v37
    %v70 = vmul.f32 %v38, %v38
    %v71 = vmul.f32 %v39, %v39
    %v72 = vmul.f32 %v40, %v40
    %v73 = vmul.f32 %v41, %v41
    %v74 = vmul.f32 %v42, %v42
    %v75 = vmul.f32 %v43, %v43
    %v76 = vmul.f32 %v44, %v44
    %v77 = vmul.f32 %v45, %v45
    %v78 = vmul.f32 %v46, %v46
    %v79 = vmul.f32 %v47, %v47
    %v80 = vmul.f32 %v48, %v48
    %v81 = vmul.f32 %v49, %v49
    %v82 = vmul.f32 %v50, %v50
    %v83 = vmul.f32 %v51, %v51
    %v84 = vmul.f32 %v52, %v52
    %v85 = vmul.f32 %v53, %v53
    %v86 = vmul.f32 %v54, %v54
    %v87 = vmul.f32 %v55, %v55
    %v88 = vmul.f32 %v56, %v56
    %v89 = vmul.f32 %v57, %v57
    %v90 = vmul.f32 %v58, %v58
    %91 = vadd.xlane.f32.xlu0 %v59
    %v92 = vpop.xlane.xlu0 %91
    %93 = vadd.xlane.f32.xlu0 %v60
    %v94 = vpop.xlane.xlu0 %93
    %95 = vadd.xlane.f32.xlu0 %v61
    %v96 = vpop.xlane.xlu0 %95
    %97 = vadd.xlane.f32.xlu0 %v62
    %v98 = vpop.xlane.xlu0 %97
    %99 = vadd.xlane.f32.xlu0 %v63
    %v100 = vpop.xlane.xlu0 %99
    %101 = vadd.xlane.f32.xlu0 %v64
    %v102 = vpop.xlane.xlu0 %101
    %103 = vadd.xlane.f32.xlu0 %v65
    %v104 = vpop.xlane.xlu0 %103
    %105 = vadd.xlane.f32.xlu0 %v66
    %v106 = vpop.xlane.xlu0 %105
    %107 = vadd.xlane.f32.xlu0 %v67
    %v108 = vpop.xlane.xlu0 %107
    %109 = vadd.xlane.f32.xlu0 %v68
    %v110 = vpop.xlane.xlu0 %109
    %111 = vadd.xlane.f32.xlu0 %v69
    %v112 = vpop.xlane.xlu0 %111
    %113 = vadd.xlane.f32.xlu0 %v70
    %v114 = vpop.xlane.xlu0 %113
    %115 = vadd.xlane.f32.xlu0 %v71
    %v116 = vpop.xlane.xlu0 %115
    %117 = vadd.xlane.f32.xlu0 %v72
    %v118 = vpop.xlane.xlu0 %117
    %119 = vadd.xlane.f32.xlu0 %v73
    %v120 = vpop.xlane.xlu0 %119
    %121 = vadd.xlane.f32.xlu0 %v74
    %v122 = vpop.xlane.xlu0 %121
    %123 = vadd.xlane.f32.xlu0 %v75
    %v124 = vpop.xlane.xlu0 %123
    %125 = vadd.xlane.f32.xlu0 %v76
    %v126 = vpop.xlane.xlu0 %125
    %127 = vadd.xlane.f32.xlu0 %v77
    %v128 = vpop.xlane.xlu0 %127
    %129 = vadd.xlane.f32.xlu0 %v78
    %v130 = vpop.xlane.xlu0 %129
    %131 = vadd.xlane.f32.xlu0 %v79
    %v132 = vpop.xlane.xlu0 %131
    %133 = vadd.xlane.f32.xlu0 %v80
    %v134 = vpop.xlane.xlu0 %133
    %135 = vadd.xlane.f32.xlu0 %v81
    %v136 = vpop.xlane.xlu0 %135
    %137 = vadd.xlane.f32.xlu0 %v82
    %v138 = vpop.xlane.xlu0 %137
    %139 = vadd.xlane.f32.xlu0 %v83
    %v140 = vpop.xlane.xlu0 %139
    %141 = vadd.xlane.f32.xlu0 %v84
    %v142 = vpop.xlane.xlu0 %141
    %143 = vadd.xlane.f32.xlu0 %v85
    %v144 = vpop.xlane.xlu0 %143
    %145 = vadd.xlane.f32.xlu0 %v86
    %v146 = vpop.xlane.xlu0 %145
    %147 = vadd.xlane.f32.xlu0 %v87
    %v148 = vpop.xlane.xlu0 %147
    %149 = vadd.xlane.f32.xlu0 %v88
    %v150 = vpop.xlane.xlu0 %149
    %151 = vadd.xlane.f32.xlu0 %v89
    %v152 = vpop.xlane.xlu0 %151
    %153 = vadd.xlane.f32.xlu0 %v90
    %v154 = vpop.xlane.xlu0 %153
    %v155 = vmax.f32 %v92, 1e-24
    %v156 = vmax.f32 %v94, 1e-24
    %v157 = vmax.f32 %v96, 1e-24
    %v158 = vmax.f32 %v98, 1e-24
    %v159 = vmax.f32 %v100, 1e-24
    %v160 = vmax.f32 %v102, 1e-24
    %v161 = vmax.f32 %v104, 1e-24
    %v162 = vmax.f32 %v106, 1e-24
    %v163 = vmax.f32 %v108, 1e-24
    %v164 = vmax.f32 %v110, 1e-24
    %v165 = vmax.f32 %v112, 1e-24
    %v166 = vmax.f32 %v114, 1e-24
    %v167 = vmax.f32 %v116, 1e-24
    %v168 = vmax.f32 %v118, 1e-24
    %v169 = vmax.f32 %v120, 1e-24
    %v170 = vmax.f32 %v122, 1e-24
    %v171 = vmax.f32 %v124, 1e-24
    %v172 = vmax.f32 %v126, 1e-24
    %v173 = vmax.f32 %v128, 1e-24
    %v174 = vmax.f32 %v130, 1e-24
    %v175 = vmax.f32 %v132, 1e-24
    %v176 = vmax.f32 %v134, 1e-24
    %v177 = vmax.f32 %v136, 1e-24
    %v178 = vmax.f32 %v138, 1e-24
    %v179 = vmax.f32 %v140, 1e-24
    %v180 = vmax.f32 %v142, 1e-24
    %v181 = vmax.f32 %v144, 1e-24
    %v182 = vmax.f32 %v146, 1e-24
    %v183 = vmax.f32 %v148, 1e-24
    %v184 = vmax.f32 %v150, 1e-24
    %v185 = vmax.f32 %v152, 1e-24
    %v186 = vmax.f32 %v154, 1e-24
    %v187 = vrsqrt.pop %v155
    %v188 = vrsqrt.pop %v156
    %v189 = vrsqrt.pop %v157
    %v190 = vrsqrt.pop %v158
    %v191 = vrsqrt.pop %v159
    %v192 = vrsqrt.pop %v160
    %v193 = vrsqrt.pop %v161
    %v194 = vrsqrt.pop %v162
    %v195 = vrsqrt.pop %v163
    %v196 = vrsqrt.pop %v164
    %v197 = vrsqrt.pop %v165
    %v198 = vrsqrt.pop %v166
    %v199 = vrsqrt.pop %v167
    %v200 = vrsqrt.pop %v168
    %v201 = vrsqrt.pop %v169
    %v202 = vrsqrt.pop %v170
    %v203 = vrsqrt.pop %v171
    %v204 = vrsqrt.pop %v172
    %v205 = vrsqrt.pop %v173
    %v206 = vrsqrt.pop %v174
    %v207 = vrsqrt.pop %v175
    %v208 = vrsqrt.pop %v176
    %v209 = vrsqrt.pop %v177
    %v210 = vrsqrt.pop %v178
    %v211 = vrsqrt.pop %v179
    %v212 = vrsqrt.pop %v180
    %v213 = vrsqrt.pop %v181
    %v214 = vrsqrt.pop %v182
    %v215 = vrsqrt.pop %v183
    %v216 = vrsqrt.pop %v184
    %v217 = vrsqrt.pop %v185
    %v218 = vrsqrt.pop %v186
    %s219 = sld [smem:[#allocation2]]
    %v220 = vstv %s219
    %v221 = vmul.f32 %v187, %v220
    %v222 = vmul.f32 %v188, %v220
    %v223 = vmul.f32 %v189, %v220
    %v224 = vmul.f32 %v190, %v220
    %v225 = vmul.f32 %v191, %v220
    %v226 = vmul.f32 %v192, %v220
    %v227 = vmul.f32 %v193, %v220
    %v228 = vmul.f32 %v194, %v220
    %v229 = vmul.f32 %v195, %v220
    %v230 = vmul.f32 %v196, %v220
    %v231 = vmul.f32 %v197, %v220
    %v232 = vmul.f32 %v198, %v220
    %v233 = vmul.f32 %v199, %v220
    %v234 = vmul.f32 %v200, %v220
    %v235 = vmul.f32 %v201, %v220
    %v236 = vmul.f32 %v202, %v220
    %v237 = vmul.f32 %v203, %v220
    %v238 = vmul.f32 %v204, %v220
    %v239 = vmul.f32 %v205, %v220
    %v240 = vmul.f32 %v206, %v220
    %v241 = vmul.f32 %v207, %v220
    %v242 = vmul.f32 %v208, %v220
    %v243 = vmul.f32 %v209, %v220
    %v244 = vmul.f32 %v210, %v220
    %v245 = vmul.f32 %v211, %v220
    %v246 = vmul.f32 %v212, %v220
    %v247 = vmul.f32 %v213, %v220
    %v248 = vmul.f32 %v214, %v220
    %v249 = vmul.f32 %v215, %v220
    %v250 = vmul.f32 %v216, %v220
    %v251 = vmul.f32 %v217, %v220
    %v252 = vmul.f32 %v218, %v220
    %v253 = vmul.f32 %v27, %v221
    %v254 = vmul.f32 %v28, %v222
    %v255 = vmul.f32 %v29, %v223
    %v256 = vmul.f32 %v30, %v224
    %v257 = vmul.f32 %v31, %v225
    %v258 = vmul.f32 %v32, %v226
    %v259 = vmul.f32 %v33, %v227
    %v260 = vmul.f32 %v34, %v228
    %v261 = vmul.f32 %v35, %v229
    %v262 = vmul.f32 %v36, %v230
    %v263 = vmul.f32 %v37, %v231
    %v264 = vmul.f32 %v38, %v232
    %v265 = vmul.f32 %v39, %v233
    %v266 = vmul.f32 %v40, %v234
    %v267 = vmul.f32 %v41, %v235
    %v268 = vmul.f32 %v42, %v236
    %v269 = vmul.f32 %v43, %v237
    %v270 = vmul.f32 %v44, %v238
    %v271 = vmul.f32 %v45, %v239
    %v272 = vmul.f32 %v46, %v240
    %v273 = vmul.f32 %v47, %v241
    %v274 = vmul.f32 %v48, %v242
    %v275 = vmul.f32 %v49, %v243
    %v276 = vmul.f32 %v50, %v244
    %v277 = vmul.f32 %v51, %v245
    %v278 = vmul.f32 %v52, %v246
    %v279 = vmul.f32 %v53, %v247
    %v280 = vmul.f32 %v54, %v248
    %v281 = vmul.f32 %v55, %v249
    %v282 = vmul.f32 %v56, %v250
    %v283 = vmul.f32 %v57, %v251
    %v284 = vmul.f32 %v58, %v252
    %285 = vst [vmem:[#allocation6] sm:$0xff] %v253
    %286 = vst [vmem:[#allocation6 + $0x8] sm:$0xff] %v254
    %287 = vst [vmem:[#allocation6 + $0x10] sm:$0xff] %v255
    %288 = vst [vmem:[#allocation6 + $0x18] sm:$0xff] %v256
    %289 = vst [vmem:[#allocation6 + $0x20] sm:$0xff] %v257
    %290 = vst [vmem:[#allocation6 + $0x28] sm:$0xff] %v258
    %291 = vst [vmem:[#allocation6 + $0x30] sm:$0xff] %v259
    %292 = vst [vmem:[#allocation6 + $0x38] sm:$0xff] %v260
    %293 = vst [vmem:[#allocation6 + $0x40] sm:$0xff] %v261
    %294 = vst [vmem:[#allocation6 + $0x48] sm:$0xff] %v262
    %295 = vst [vmem:[#allocation6 + $0x50] sm:$0xff] %v263
    %296 = vst [vmem:[#allocation6 + $0x58] sm:$0xff] %v264
    %297 = vst [vmem:[#allocation6 + $0x60] sm:$0xff] %v265
    %298 = vst [vmem:[#allocation6 + $0x68] sm:$0xff] %v266
    %299 = vst [vmem:[#allocation6 + $0x70] sm:$0xff] %v267
    %300 = vst [vmem:[#allocation6 + $0x78] sm:$0xff] %v268
    %301 = vst [vmem:[#allocation6 + $0x80] sm:$0xff] %v269
    %302 = vst [vmem:[#allocation6 + $0x88] sm:$0xff] %v270
    %303 = vst [vmem:[#allocation6 + $0x90] sm:$0xff] %v271
    %304 = vst [vmem:[#allocation6 + $0x98] sm:$0xff] %v272
    %305 = vst [vmem:[#allocation6 + $0xa0] sm:$0xff] %v273
    %306 = vst [vmem:[#allocation6 + $0xa8] sm:$0xff] %v274
    %307 = vst [vmem:[#allocation6 + $0xb0] sm:$0xff] %v275
    %308 = vst [vmem:[#allocation6 + $0xb8] sm:$0xff] %v276
    %309 = vst [vmem:[#allocation6 + $0xc0] sm:$0xff] %v277
    %310 = vst [vmem:[#allocation6 + $0xc8] sm:$0xff] %v278
    %311 = vst [vmem:[#allocation6 + $0xd0] sm:$0xff] %v279
    %312 = vst [vmem:[#allocation6 + $0xd8] sm:$0xff] %v280
    %313 = vst [vmem:[#allocation6 + $0xe0] sm:$0xff] %v281
    %314 = vst [vmem:[#allocation6 + $0xe8] sm:$0xff] %v282
    %315 = vst [vmem:[#allocation6 + $0xf0] sm:$0xff] %v283
    %316 = vst [vmem:[#allocation6 + $0xf8] sm:$0xff] %v284
    // Predicated region
    $region14: #{tpu_custom_call.1} parent=1 // pred_check
      _
    $region15: #{tpu_custom_call.1} parent=1 // pred_check_branch
      %318 = sbr.rel (0) target = $region17
    $region16: #{tpu_custom_call.1} parent=1 // pred_region
      %s320 = ssub.s32 4096, 4096
      %321 = vsyncadd [#allocation5], %s320
      %s322 = sshll.u32 [#allocation6], 4
      %s323 = int_to_ptr.vmem [resolvable:$true] %s322
      %328 = dma.vmem_to_hbm [thread:$0]  %s323, 4096, %s2, [#allocation5], 128, 128, 8
    $region17: #{tpu_custom_call.1} parent=1 // pred_fallthru
      _
    // Predicated region
    $region18: #{tpu_custom_call.1} parent=1 // pred_check
      _
    $region19: #{tpu_custom_call.1} parent=1 // pred_check_branch
      %330 = sbr.rel (0) target = $region21
    $region20: #{tpu_custom_call.1} parent=1 // pred_region
      %331 = dma.done [#allocation5], 4096
    $region21: #{tpu_custom_call.1} parent=1 // pred_fallthru
      _
    %332 = vsyncpa [#allocation4], 1
    %333 = vsyncpa [#allocation5], 1

</llo_original>
